<compile_context>
chip_gen: v5e
topology: v5e:2x2
jax: 0.10.0
libtpu: 0.0.40
codegen_flags: <defaults>
</compile_context>

<pallas_src>
import jax
import jax.numpy as jnp
from jax.experimental import pallas as pl
from jax.experimental.pallas import tpu as pltpu


def make_attention_kernel(Bblk, N, hd, heads, scale):
    def kernel(x_ref, wqkv_ref, bqkv_ref, wproj_ref, bproj_ref,
               out_ref, attn_ref):
        h = pl.program_id(1)

        @pl.when(h == 0)
        def _init():
            out_ref[...] = jnp.zeros_like(out_ref)

        wqkv = wqkv_ref[0]      # (C, 3*hd) bf16
        bqkv = bqkv_ref[0]      # (1, 3*hd) f32
        wproj = wproj_ref[0]    # (hd, C)   bf16

        def body(bb, carry):
            xb = x_ref[bb]                                        # (N, C) bf16

            # fused q/k/v projection for this head: one (N,C)x(C,3hd) matmul
            qkv = (jnp.dot(xb, wqkv, preferred_element_type=jnp.float32)
                   + bqkv).astype(jnp.bfloat16)                   # (N, 3hd)
            qb = qkv[:, 0:hd]
            kb = qkv[:, hd:2 * hd]
            vb = qkv[:, 2 * hd:3 * hd]

            # scores: contract last dims of q and k -> no materialized k^T
            s = jax.lax.dot_general(
                qb, kb, (((1,), (1,)), ((), ())),
                preferred_element_type=jnp.float32) * scale       # (N, N) f32

            # numerically stable softmax (f32 stats, EUP reciprocal)
            s = s - jnp.max(s, axis=-1, keepdims=True)
            e = jnp.exp(s)
            p = e * pl.reciprocal(jnp.sum(e, axis=-1, keepdims=True),
                                  approx=True)

            attn_ref[bb, 0] = p.astype(attn_ref.dtype)

            # per-head context and its output-projection contribution,
            # accumulated directly into the resident out_ref block
            ctx = jnp.dot(p.astype(jnp.bfloat16), vb,
                          preferred_element_type=jnp.float32)     # (N, hd)
            proj = jnp.dot(ctx.astype(jnp.bfloat16), wproj,
                           preferred_element_type=jnp.float32)    # (N, C)
            out_ref[bb] = out_ref[bb] + proj
            return carry

        jax.lax.fori_loop(0, Bblk, body, None, unroll=(Bblk <= 4))

        @pl.when(h == heads - 1)
        def _finish():
            out_ref[...] = out_ref[...] + bproj_ref[...]

    return kernel


def _pick_batch_block(B, N, max_rows=512):
    """Pick the batch block size.

    Prefers the largest divisor of B that (a) keeps Bblk*N rows VMEM-friendly
    and (b) leaves >= 2 steps on the parallel batch grid axis (v7x has two
    TensorCores and this is the only shardable axis). Falls back to the
    largest VMEM-friendly divisor, then to 1.
    Raise max_rows toward 1024-2048 on v5e/v6e (128 MiB VMEM); keep ~512 on
    v7x (64 MiB VMEM).
    """
    best_parallel = None
    best_any = 1
    for cand in range(1, B + 1):
        if B % cand or cand * N > max_rows:
            continue
        best_any = cand
        if B // cand >= 2:
            best_parallel = cand
    return best_parallel if best_parallel is not None else best_any


def attention_forward(x, wqkv, bqkv, wproj, bproj, heads, *,
                      attn_dtype=jnp.float32, max_rows=512):
    B, N, C = x.shape
    assert C % heads == 0
    hd = C // heads
    scale = float(hd) ** (-0.5)

    Bblk = _pick_batch_block(B, N, max_rows=max_rows)
    assert B % Bblk == 0

    # ---- wrapper-side restructuring (layout plumbing, not compute) ----------
    # qkv Linear output columns are ordered (qkv_idx, head, d); regroup so each
    # head owns a contiguous (C, 3*hd) tile with q|k|v side by side.
    wqkv_h = (wqkv.reshape(C, 3, heads, hd)
              .transpose(2, 0, 1, 3)
              .reshape(heads, C, 3 * hd)
              .astype(jnp.bfloat16))                               # (H, C, 3hd)
    bqkv_h = (bqkv.reshape(3, heads, hd)
              .transpose(1, 0, 2)
              .reshape(heads, 1, 3 * hd)
              .astype(jnp.float32))                                # (H, 1, 3hd)
    wproj_h = wproj.reshape(heads, hd, C).astype(jnp.bfloat16)     # (H, hd, C)
    bproj3 = bproj.reshape(1, 1, C).astype(jnp.float32)            # (1, 1, C)
    x_bf = x.astype(jnp.bfloat16)                                  # (B, N, C)

    # ---- VMEM budget: real per-step footprint (double-buffered blocks) ------
    bf16_b, f32_b = 2, 4
    attn_b = jnp.dtype(attn_dtype).itemsize
    per_step = (
        2 * Bblk * N * C * bf16_b          # x block
        + 2 * Bblk * N * C * f32_b         # out block (resident accumulator)
        + 2 * Bblk * N * N * attn_b        # attn block
        + 2 * C * 3 * hd * bf16_b          # qkv weight tile
        + 2 * 3 * hd * f32_b               # qkv bias tile
        + 2 * hd * C * bf16_b              # proj weight tile
        + 2 * C * f32_b                    # proj bias
    )
    vmem_limit = int(min(max(2 * per_step, 32 * 1024 * 1024),
                         64 * 1024 * 1024))

    kernel = make_attention_kernel(Bblk, N, hd, heads, scale)

    out, attn = pl.pallas_call(
        kernel,
        out_shape=(
            jax.ShapeDtypeStruct((B, N, C), jnp.float32),
            jax.ShapeDtypeStruct((B, heads, N, N), attn_dtype),
        ),
        grid_spec=pltpu.PrefetchScalarGridSpec(
            num_scalar_prefetch=0,
            grid=(B // Bblk, heads),
            in_specs=[
                pl.BlockSpec((Bblk, N, C), lambda b, h: (b, 0, 0)),     # x
                pl.BlockSpec((1, C, 3 * hd), lambda b, h: (h, 0, 0)),   # Wqkv
                pl.BlockSpec((1, 1, 3 * hd), lambda b, h: (h, 0, 0)),   # bqkv
                pl.BlockSpec((1, hd, C), lambda b, h: (h, 0, 0)),       # Wproj
                pl.BlockSpec((1, 1, C), lambda b, h: (0, 0, 0)),        # bproj
            ],
            out_specs=[
                pl.BlockSpec((Bblk, N, C), lambda b, h: (b, 0, 0)),       # out
                pl.BlockSpec((Bblk, 1, N, N), lambda b, h: (b, h, 0, 0)),  # attn
            ],
        ),
        compiler_params=pltpu.CompilerParams(
            dimension_semantics=("parallel", "arbitrary"),
            vmem_limit_bytes=vmem_limit),
    )(x_bf, wqkv_h, bqkv_h, wproj_h, bproj3)

    return out, attn


def attention_reference(x, wqkv, bqkv, wproj, bproj, heads):
    """Pure-JAX f32 reference mirroring the PyTorch forward."""
    B, N, C = x.shape
    hd = C // heads
    scale = float(hd) ** (-0.5)
    qkv = x @ wqkv + bqkv                                        # (B, N, 3C)
    qkv = qkv.reshape(B, N, 3, heads, hd).transpose(2, 0, 3, 1, 4)
    q, k, v = qkv[0], qkv[1], qkv[2]                             # (B, H, N, hd)
    attn = jnp.einsum("bhnd,bhmd->bhnm", q, k) * scale
    attn = jax.nn.softmax(attn, axis=-1)
    y = jnp.einsum("bhnm,bhmd->bhnd", attn, v)                   # (B, H, N, hd)
    y = y.transpose(0, 2, 1, 3).reshape(B, N, C)
    out = y @ wproj + bproj
    return out, attn


if __name__ == "__main__":
    B, N, C, heads = 2, 8, 32, 4

    key = jax.random.PRNGKey(0)
    kx, k1, k2, k3, k4 = jax.random.split(key, 5)

    x = jax.random.normal(kx, (B, N, C), dtype=jnp.float32)

    # nn.Linear-like parameters, stored (in, out) so that y = x @ W + b.
    wqkv = jax.random.normal(k1, (C, 3 * C), dtype=jnp.float32) * 0.05
    bqkv = jax.random.normal(k2, (3 * C,), dtype=jnp.float32) * 0.05
    wproj = jax.random.normal(k3, (C, C), dtype=jnp.float32) * 0.05
    bproj = jax.random.normal(k4, (C,), dtype=jnp.float32) * 0.05

    out, attn = attention_forward(x, wqkv, bqkv, wproj, bproj, heads)
    out = jax.block_until_ready(out)
    attn = jax.block_until_ready(attn)

    out_ref, attn_ref = attention_reference(x, wqkv, bqkv, wproj, bproj, heads)
    assert out.shape == (B, N, C)
    assert attn.shape == (B, heads, N, N)
    # tolerance accounts for bf16 MXU inputs (f32 accumulation) + approx recip
    assert jnp.allclose(out, out_ref, atol=2e-2, rtol=2e-2)
    assert jnp.allclose(attn, attn_ref, atol=2e-2, rtol=2e-2)

    print("KERNEL_OK")
</pallas_src>

<mosaic_0001>
module attributes {stable_mosaic.version = 11 : i64} {
  func.func @kernel(%arg0: i32, %arg1: i32, %arg2: memref<1x8x32xbf16, #tpu.memory_space<vmem>>, %arg3: memref<1x32x24xbf16, #tpu.memory_space<vmem>>, %arg4: memref<1x1x24xf32, #tpu.memory_space<vmem>>, %arg5: memref<1x8x32xbf16, #tpu.memory_space<vmem>>, %arg6: memref<1x1x32xf32, #tpu.memory_space<vmem>>, %arg7: memref<1x8x32xf32, #tpu.memory_space<vmem>>, %arg8: memref<1x1x8x8xf32, #tpu.memory_space<vmem>>) attributes {dimension_semantics = [#tpu.dimension_semantics<parallel>, #tpu.dimension_semantics<arbitrary>], iteration_bounds = array<i64: 2, 4>, scalar_prefetch = 0 : i64, scratch_operands = 0 : i64, tpu.core_type = #tpu.core_type<tc>, window_params = [{transform_indices = @transform_0, window_bounds = array<i64: 1, 8, 32>}, {transform_indices = @transform_1, window_bounds = array<i64: 1, 32, 24>}, {transform_indices = @transform_2, window_bounds = array<i64: 1, 1, 24>}, {transform_indices = @transform_3, window_bounds = array<i64: 1, 8, 32>}, {pipeline_mode = #tpu.pipeline_mode<synchronous>, transform_indices = @transform_4, window_bounds = array<i64: 1, 1, 32>}, {transform_indices = @transform_5, window_bounds = array<i64: 1, 8, 32>}, {transform_indices = @transform_6, window_bounds = array<i64: 1, 1, 8, 8>}]} {
    %c0_i32 = arith.constant 0 : i32
    %0 = arith.cmpi eq, %arg1, %c0_i32 : i32
    %1 = arith.extui %0 : i1 to i32
    %c0_i32_0 = arith.constant 0 : i32
    %2 = arith.cmpi ne, %1, %c0_i32_0 : i32
    scf.if %2 {
      %cst_26 = arith.constant 0.000000e+00 : f32
      %51 = vector.broadcast %cst_26 : f32 to vector<1x8x32xf32>
      %c0_27 = arith.constant 0 : index
      %c0_28 = arith.constant 0 : index
      %c0_29 = arith.constant 0 : index
      %52 = vector.load %arg7[%c0_27, %c0_28, %c0_29] : memref<1x8x32xf32, #tpu.memory_space<vmem>>, vector<1x8x32xf32>
      tpu.vector_store %arg7[%c0_27, %c0_28, %c0_29], %51 {strides = array<i32>} : memref<1x8x32xf32, #tpu.memory_space<vmem>>, vector<1x8x32xf32>,
    } else {
    }
    %c0 = arith.constant 0 : index
    %c0_1 = arith.constant 0 : index
    %c0_2 = arith.constant 0 : index
    %3 = vector.load %arg3[%c0, %c0_1, %c0_2] : memref<1x32x24xbf16, #tpu.memory_space<vmem>>, vector<1x32x24xbf16>
    %4 = vector.shape_cast %3 : vector<1x32x24xbf16> to vector<32x24xbf16>
    %c0_3 = arith.constant 0 : index
    %c0_4 = arith.constant 0 : index
    %c0_5 = arith.constant 0 : index
    %5 = vector.load %arg4[%c0_3, %c0_4, %c0_5] : memref<1x1x24xf32, #tpu.memory_space<vmem>>, vector<1x1x24xf32>
    %6 = vector.shape_cast %5 : vector<1x1x24xf32> to vector<1x24xf32>
    %c0_6 = arith.constant 0 : index
    %c0_7 = arith.constant 0 : index
    %c0_8 = arith.constant 0 : index
    %7 = vector.load %arg5[%c0_6, %c0_7, %c0_8] : memref<1x8x32xbf16, #tpu.memory_space<vmem>>, vector<1x8x32xbf16>
    %8 = vector.shape_cast %7 : vector<1x8x32xbf16> to vector<8x32xbf16>
    %c0_i32_9 = arith.constant 0 : i32
    %9 = arith.index_cast %c0_i32_9 : i32 to index
    %c0_10 = arith.constant 0 : index
    %c0_11 = arith.constant 0 : index
    %10 = vector.load %arg2[%9, %c0_10, %c0_11] : memref<1x8x32xbf16, #tpu.memory_space<vmem>>, vector<1x8x32xbf16>
    %11 = vector.shape_cast %10 : vector<1x8x32xbf16> to vector<8x32xbf16>
    %cst = arith.constant dense<0.000000e+00> : vector<8x24xf32>
    %12 = tpu.matmul %11, %4, %cst {dimension_numbers = #tpu.dot_dimension_numbers<[1], [0], [0], [1], [0, 0, 1, 1], [], []>} : vector<8x32xbf16>, vector<32x24xbf16>, vector<8x24xf32> -> vector<8x24xf32>
    %13 = vector.broadcast %6 : vector<1x24xf32> to vector<8x24xf32>
    %14 = arith.addf %12, %13 : vector<8x24xf32>
    %15 = arith.truncf %14 : vector<8x24xf32> to vector<8x24xbf16>
    %16 = vector.extract_strided_slice %15 {offsets = [0, 0], sizes = [8, 8], strides = [1, 1]} : vector<8x24xbf16> to vector<8x8xbf16>
    %17 = vector.extract_strided_slice %15 {offsets = [0, 8], sizes = [8, 8], strides = [1, 1]} : vector<8x24xbf16> to vector<8x8xbf16>
    %18 = vector.extract_strided_slice %15 {offsets = [0, 16], sizes = [8, 8], strides = [1, 1]} : vector<8x24xbf16> to vector<8x8xbf16>
    %cst_12 = arith.constant dense<0.000000e+00> : vector<8x8xf32>
    %19 = tpu.matmul %16, %17, %cst_12 {dimension_numbers = #tpu.dot_dimension_numbers<[1], [1], [0], [0], [0, 0, 1, 0], [], []>} : vector<8x8xbf16>, vector<8x8xbf16>, vector<8x8xf32> -> vector<8x8xf32>
    %cst_13 = arith.constant 0.353553385 : f32
    %20 = vector.broadcast %cst_13 : f32 to vector<8x8xf32>
    %21 = arith.mulf %19, %20 : vector<8x8xf32>
    %cst_14 = arith.constant dense<0xFF800000> : vector<8xf32>
    %22 = vector.multi_reduction <maximumf>, %21, %cst_14 [1] : vector<8x8xf32> to vector<8xf32>
    %23 = vector.shape_cast %22 : vector<8xf32> to vector<8x1xf32>
    %24 = vector.broadcast %23 : vector<8x1xf32> to vector<8x8xf32>
    %25 = arith.subf %21, %24 : vector<8x8xf32>
    %26 = math.exp %25 : vector<8x8xf32>
    %cst_15 = arith.constant dense<0.000000e+00> : vector<8xf32>
    %27 = vector.multi_reduction <add>, %26, %cst_15 [1] : vector<8x8xf32> to vector<8xf32>
    %28 = vector.shape_cast %27 : vector<8xf32> to vector<8x1xf32>
    %29 = tpu.reciprocal %28 {approx = true} : vector<8x1xf32> -> vector<8x1xf32>
    %30 = vector.broadcast %29 : vector<8x1xf32> to vector<8x8xf32>
    %31 = arith.mulf %26, %30 : vector<8x8xf32>
    %32 = arith.index_cast %c0_i32_9 : i32 to index
    %c0_16 = arith.constant 0 : index
    %c0_17 = arith.constant 0 : index
    %c0_18 = arith.constant 0 : index
    %33 = vector.load %arg8[%32, %c0_16, %c0_17, %c0_18] : memref<1x1x8x8xf32, #tpu.memory_space<vmem>>, vector<1x1x8x8xf32>
    %34 = vector.shape_cast %33 : vector<1x1x8x8xf32> to vector<8x8xf32>
    %35 = vector.shape_cast %31 : vector<8x8xf32> to vector<1x1x8x8xf32>
    tpu.vector_store %arg8[%32, %c0_16, %c0_17, %c0_18], %35 {strides = array<i32>} : memref<1x1x8x8xf32, #tpu.memory_space<vmem>>, vector<1x1x8x8xf32>,
    %36 = arith.truncf %31 : vector<8x8xf32> to vector<8x8xbf16>
    %cst_19 = arith.constant dense<0.000000e+00> : vector<8x8xf32>
    %37 = tpu.matmul %36, %18, %cst_19 {dimension_numbers = #tpu.dot_dimension_numbers<[1], [0], [0], [1], [0, 0, 1, 1], [], []>} : vector<8x8xbf16>, vector<8x8xbf16>, vector<8x8xf32> -> vector<8x8xf32>
    %38 = arith.truncf %37 : vector<8x8xf32> to vector<8x8xbf16>
    %cst_20 = arith.constant dense<0.000000e+00> : vector<8x32xf32>
    %39 = tpu.matmul %38, %8, %cst_20 {dimension_numbers = #tpu.dot_dimension_numbers<[1], [0], [0], [1], [0, 0, 1, 1], [], []>} : vector<8x8xbf16>, vector<8x32xbf16>, vector<8x32xf32> -> vector<8x32xf32>
    %40 = arith.index_cast %c0_i32_9 : i32 to index
    %c0_21 = arith.constant 0 : index
    %c0_22 = arith.constant 0 : index
    %41 = vector.load %arg7[%40, %c0_21, %c0_22] : memref<1x8x32xf32, #tpu.memory_space<vmem>>, vector<1x8x32xf32>
    %42 = vector.shape_cast %41 : vector<1x8x32xf32> to vector<8x32xf32>
    %43 = arith.addf %42, %39 : vector<8x32xf32>
    %44 = arith.index_cast %c0_i32_9 : i32 to index
    %c0_23 = arith.constant 0 : index
    %c0_24 = arith.constant 0 : index
    %45 = vector.load %arg7[%44, %c0_23, %c0_24] : memref<1x8x32xf32, #tpu.memory_space<vmem>>, vector<1x8x32xf32>
    %46 = vector.shape_cast %45 : vector<1x8x32xf32> to vector<8x32xf32>
    %47 = vector.shape_cast %43 : vector<8x32xf32> to vector<1x8x32xf32>
    tpu.vector_store %arg7[%44, %c0_23, %c0_24], %47 {strides = array<i32>} : memref<1x8x32xf32, #tpu.memory_space<vmem>>, vector<1x8x32xf32>,
    %c1_i32 = arith.constant 1 : i32
    %c3_i32 = arith.constant 3 : i32
    %48 = arith.cmpi eq, %arg1, %c3_i32 : i32
    %49 = arith.extui %48 : i1 to i32
    %c0_i32_25 = arith.constant 0 : i32
    %50 = arith.cmpi ne, %49, %c0_i32_25 : i32
    scf.if %50 {
      %c0_26 = arith.constant 0 : index
      %c0_27 = arith.constant 0 : index
      %c0_28 = arith.constant 0 : index
      %51 = vector.load %arg7[%c0_26, %c0_27, %c0_28] : memref<1x8x32xf32, #tpu.memory_space<vmem>>, vector<1x8x32xf32>
      %c0_29 = arith.constant 0 : index
      %c0_30 = arith.constant 0 : index
      %c0_31 = arith.constant 0 : index
      %52 = vector.load %arg6[%c0_29, %c0_30, %c0_31] : memref<1x1x32xf32, #tpu.memory_space<vmem>>, vector<1x1x32xf32>
      %53 = vector.broadcast %52 : vector<1x1x32xf32> to vector<1x8x32xf32>
      %54 = arith.addf %51, %53 : vector<1x8x32xf32>
      %c0_32 = arith.constant 0 : index
      %c0_33 = arith.constant 0 : index
      %c0_34 = arith.constant 0 : index
      %55 = vector.load %arg7[%c0_32, %c0_33, %c0_34] : memref<1x8x32xf32, #tpu.memory_space<vmem>>, vector<1x8x32xf32>
      tpu.vector_store %arg7[%c0_32, %c0_33, %c0_34], %54 {strides = array<i32>} : memref<1x8x32xf32, #tpu.memory_space<vmem>>, vector<1x8x32xf32>,
    } else {
    }
    return
  }
  func.func @transform_0(%arg0: i32, %arg1: i32) -> (i32, i32, i32) {
    %c0_i32 = arith.constant 0 : i32
    %c0_i32_0 = arith.constant 0 : i32
    %c0_i32_1 = arith.constant 0 : i32
    return %arg0, %c0_i32, %c0_i32_0 : i32, i32, i32
  }
  func.func @transform_1(%arg0: i32, %arg1: i32) -> (i32, i32, i32) {
    %c0_i32 = arith.constant 0 : i32
    %c0_i32_0 = arith.constant 0 : i32
    %c0_i32_1 = arith.constant 0 : i32
    return %arg1, %c0_i32, %c0_i32_0 : i32, i32, i32
  }
  func.func @transform_2(%arg0: i32, %arg1: i32) -> (i32, i32, i32) {
    %c0_i32 = arith.constant 0 : i32
    %c0_i32_0 = arith.constant 0 : i32
    %c0_i32_1 = arith.constant 0 : i32
    return %arg1, %c0_i32, %c0_i32_0 : i32, i32, i32
  }
  func.func @transform_3(%arg0: i32, %arg1: i32) -> (i32, i32, i32) {
    %c0_i32 = arith.constant 0 : i32
    %c0_i32_0 = arith.constant 0 : i32
    %c0_i32_1 = arith.constant 0 : i32
    return %arg1, %c0_i32, %c0_i32_0 : i32, i32, i32
  }
  func.func @transform_4(%arg0: i32, %arg1: i32) -> (i32, i32, i32) {
    %c0_i32 = arith.constant 0 : i32
    %c0_i32_0 = arith.constant 0 : i32
    %c0_i32_1 = arith.constant 0 : i32
    %c0_i32_2 = arith.constant 0 : i32
    return %c0_i32, %c0_i32_0, %c0_i32_1 : i32, i32, i32
  }
  func.func @transform_5(%arg0: i32, %arg1: i32) -> (i32, i32, i32) {
    %c0_i32 = arith.constant 0 : i32
    %c0_i32_0 = arith.constant 0 : i32
    %c0_i32_1 = arith.constant 0 : i32
    return %arg0, %c0_i32, %c0_i32_0 : i32, i32, i32
  }
  func.func @transform_6(%arg0: i32, %arg1: i32) -> (i32, i32, i32, i32) {
    %c0_i32 = arith.constant 0 : i32
    %c0_i32_0 = arith.constant 0 : i32
    %c0_i32_1 = arith.constant 0 : i32
    return %arg0, %arg1, %c0_i32, %c0_i32_0 : i32, i32, i32, i32
  }
}

</mosaic_0001>

<llo_original>
// kernel: tpu_custom_call.1
$region0: #{tpu_custom_call.1}
  #allocation0 [shape = 'u32[]', space=smem, size = 0x4, offset = 0x4, fixed_abs, tag = 'smem constant byte address 0x4 - core index']
  #allocation1 [shape = 'u32[72,128]{1,0:T(1,128)}', space=vmem, size = 0x9000, scoped, tag = 'internal scratch']
  %s0 = inlined_call_operand.vmem [shape: bf16[2,8,32], index: 0, kind: input, shape index: {}]
  %s1 = inlined_call_operand.vmem [shape: bf16[4,32,24], index: 1, kind: input, shape index: {}]
  %s2 = inlined_call_operand.vmem [shape: f32[4,1,24], index: 2, kind: input, shape index: {}]
  %s3 = inlined_call_operand.vmem [shape: bf16[4,8,32], index: 3, kind: input, shape index: {}]
  %s4 = inlined_call_operand.vmem [shape: f32[1,1,32], index: 4, kind: input, shape index: {}]
  %s5 = inlined_call_operand.hbm [shape: f32[2,8,32], index: 5, kind: output, shape index: {0}]
  %s6 = inlined_call_operand.hbm [shape: f32[2,4,8,8], index: 6, kind: output, shape index: {1}]
  %7 = xla_tuple %s5, %s6
  %s8 = sld [smem:[#allocation0]]
  $region69: #{tpu_custom_call.1} parent=0
    _
  %s10 = ssub.s32 1, %s8
  %s11 = scalar_select 0, %s10, %s8
  $region1: #{tpu_custom_call.1} parent=0
    #allocation2 [shape = 'u8[8192]{0}', space=vmem, size = 0x2000, scoped, tag = 'output window, operand 0']
    #allocation3 [shape = 's32[2]{0}', space=sflag, size = 0x8, scoped, tag = 'scoped memory for tpu_custom_call.1']
    #allocation4 [shape = 'u8[8192]{0}', space=vmem, size = 0x2000, scoped, tag = 'output window, operand 1']
    #allocation5 [shape = 's32[2]{0}', space=sflag, size = 0x8, scoped, tag = 'scoped memory for tpu_custom_call.1']
    %12 = vsyncpa [#allocation3], 0
    %s13 = scalar_lea.sflag [#allocation3], 1
    %14 = vsyncpa %s13, 0
    %15 = vsyncpa [#allocation5], 0
    %s16 = scalar_lea.sflag [#allocation5], 1
    %17 = vsyncpa %s16, 0
    loop: start=0, step=1, limit=10
    $region2: #{tpu_custom_call.1} parent=1 // loop_pre_header
      _
    $region3: #{tpu_custom_call.1} parent=1 // loop_header
      %s19 = sphi 0, %s23
      %p20 = scmp.ge.s32.totalorder %s19, 10
      %s26 = sphi 0, %s38
      %s27 = sphi 0, %s34
      %s28 = sphi 0, %s26
      %s29 = sphi 0, %s27
      %s30 = sphi 0, %s28
      %s31 = sphi 0, %s29
      %s41 = sphi 0, %s43
      %s44 = sphi 0, %s41
      %s45 = sphi 0, %s44
      %s61 = sphi 0, %s45
      %s67 = sphi 0, %s69
      %s70 = sphi 0, %s67
      %s71 = sphi 0, %s70
      %s87 = sphi 0, %s71
      %s93 = sphi 0, %s95
      %s96 = sphi 0, %s93
      %s97 = sphi 0, %s96
      %s113 = sphi 0, %s97
      %s119 = sphi 0, %s121
      %s122 = sphi 0, %s119
      %s123 = sphi 0, %s122
      %s139 = sphi 0, %s123
      %s143 = sphi 0, %s143
      %s145 = sphi 0, %s143
      %s146 = sphi 0, %s145
      %s160 = sphi 0, %s146
      %s166 = sphi 0, %s168
      %s169 = sphi 0, %s166
      %s170 = sphi 0, %s169
      %s186 = sphi 0, %s170
      %s194 = sphi 0, %s196
      %s197 = sphi 0, %s194
      %s198 = sphi 0, %s197
      %s214 = sphi 0, %s198
    $region4: #{tpu_custom_call.1} parent=1 // loop_header_branch
      %22 = sbr.rel (%p20) target = $region8
    $region5: #{tpu_custom_call.1} parent=1 // loop_body
      %s24 = ssub.s32 %s19, 1
      %s25 = ssub.s32 %s19, 2
      %s32 = sadd.s32 1, %s27
      %p33 = scmp.ge.s32.totalorder %s32, 4
      %s34 = scalar_select %p33, 0, %s32
      %s35 = sadd.s32 1, %s26
      %s36 = scalar_select %p33, %s35, %s26
      %p37 = scmp.ge.s32.totalorder %s36, 2
      %s38 = scalar_select %p37, 0, %s36
      %s39 = ssub.s32 %s26, %s38
      %p40 = scmp.eq.s32.totalorder %s39, 0
      %s42 = sadd.s32 %s41, 1
      %s43 = scalar_select %p40, %s41, %s42
      %p46 = pneg %p40
      %p47 = scmp.eq.s32.totalorder %s19, 7
      %p48 = por %p46, %p47
      %p49 = scmp.ne.s32.totalorder %s41, %s44
      %p50 = scmp.eq.s32.totalorder %s19, 0
      %p51 = por %p49, %p50
      %p52 = scmp.ne.s32.totalorder %s41, %s44
      %p53 = scmp.eq.s32.totalorder %s24, 7
      %p54 = por %p52, %p53
      %p55 = scmp.ne.s32.totalorder %s44, %s45
      %p56 = scmp.eq.s32.totalorder %s24, 0
      %p57 = por %p55, %p56
      %p58 = scmp.ne.s32.totalorder %s44, %s45
      %p59 = scmp.eq.s32.totalorder %s25, 7
      %p60 = por %p58, %p59
      %p62 = scmp.ne.s32.totalorder %s45, %s61
      %p63 = scmp.eq.s32.totalorder %s25, 0
      %p64 = por %p62, %p63
      %s65 = ssub.s32 %s27, %s34
      %p66 = scmp.eq.s32.totalorder %s65, 0
      %s68 = sadd.s32 %s67, 1
      %s69 = scalar_select %p66, %s67, %s68
      %p72 = pneg %p66
      %p73 = scmp.eq.s32.totalorder %s19, 7
      %p74 = por %p72, %p73
      %p75 = scmp.ne.s32.totalorder %s67, %s70
      %p76 = scmp.eq.s32.totalorder %s19, 0
      %p77 = por %p75, %p76
      %p78 = scmp.ne.s32.totalorder %s67, %s70
      %p79 = scmp.eq.s32.totalorder %s24, 7
      %p80 = por %p78, %p79
      %p81 = scmp.ne.s32.totalorder %s70, %s71
      %p82 = scmp.eq.s32.totalorder %s24, 0
      %p83 = por %p81, %p82
      %p84 = scmp.ne.s32.totalorder %s70, %s71
      %p85 = scmp.eq.s32.totalorder %s25, 7
      %p86 = por %p84, %p85
      %p88 = scmp.ne.s32.totalorder %s71, %s87
      %p89 = scmp.eq.s32.totalorder %s25, 0
      %p90 = por %p88, %p89
      %s91 = ssub.s32 %s27, %s34
      %p92 = scmp.eq.s32.totalorder %s91, 0
      %s94 = sadd.s32 %s93, 1
      %s95 = scalar_select %p92, %s93, %s94
      %p98 = pneg %p92
      %p99 = scmp.eq.s32.totalorder %s19, 7
      %p100 = por %p98, %p99
      %p101 = scmp.ne.s32.totalorder %s93, %s96
      %p102 = scmp.eq.s32.totalorder %s19, 0
      %p103 = por %p101, %p102
      %p104 = scmp.ne.s32.totalorder %s93, %s96
      %p105 = scmp.eq.s32.totalorder %s24, 7
      %p106 = por %p104, %p105
      %p107 = scmp.ne.s32.totalorder %s96, %s97
      %p108 = scmp.eq.s32.totalorder %s24, 0
      %p109 = por %p107, %p108
      %p110 = scmp.ne.s32.totalorder %s96, %s97
      %p111 = scmp.eq.s32.totalorder %s25, 7
      %p112 = por %p110, %p111
      %p114 = scmp.ne.s32.totalorder %s97, %s113
      %p115 = scmp.eq.s32.totalorder %s25, 0
      %p116 = por %p114, %p115
      %s117 = ssub.s32 %s27, %s34
      %p118 = scmp.eq.s32.totalorder %s117, 0
      %s120 = sadd.s32 %s119, 1
      %s121 = scalar_select %p118, %s119, %s120
      %p124 = pneg %p118
      %p125 = scmp.eq.s32.totalorder %s19, 7
      %p126 = por %p124, %p125
      %p127 = scmp.ne.s32.totalorder %s119, %s122
      %p128 = scmp.eq.s32.totalorder %s19, 0
      %p129 = por %p127, %p128
      %p130 = scmp.ne.s32.totalorder %s119, %s122
      %p131 = scmp.eq.s32.totalorder %s24, 7
      %p132 = por %p130, %p131
      %p133 = scmp.ne.s32.totalorder %s122, %s123
      %p134 = scmp.eq.s32.totalorder %s24, 0
      %p135 = por %p133, %p134
      %p136 = scmp.ne.s32.totalorder %s122, %s123
      %p137 = scmp.eq.s32.totalorder %s25, 7
      %p138 = por %p136, %p137
      %p140 = scmp.ne.s32.totalorder %s123, %s139
      %p141 = scmp.eq.s32.totalorder %s25, 0
      %p142 = por %p140, %p141
      %s144 = sadd.s32 %s143, 1
      %p147 = scmp.eq.s32.totalorder %s19, 7
      %p148 = scmp.ne.s32.totalorder %s143, %s145
      %p149 = scmp.eq.s32.totalorder %s19, 0
      %p150 = por %p148, %p149
      %p151 = scmp.ne.s32.totalorder %s143, %s145
      %p152 = scmp.eq.s32.totalorder %s24, 7
      %p153 = por %p151, %p152
      %p154 = scmp.ne.s32.totalorder %s145, %s146
      %p155 = scmp.eq.s32.totalorder %s24, 0
      %p156 = por %p154, %p155
      %p157 = scmp.ne.s32.totalorder %s145, %s146
      %p158 = scmp.eq.s32.totalorder %s25, 7
      %p159 = por %p157, %p158
      %p161 = scmp.ne.s32.totalorder %s146, %s160
      %p162 = scmp.eq.s32.totalorder %s25, 0
      %p163 = por %p161, %p162
      %s164 = ssub.s32 %s26, %s38
      %p165 = scmp.eq.s32.totalorder %s164, 0
      %s167 = sadd.s32 %s166, 1
      %s168 = scalar_select %p165, %s166, %s167
      %p171 = pneg %p165
      %p172 = scmp.eq.s32.totalorder %s19, 7
      %p173 = por %p171, %p172
      %p174 = scmp.ne.s32.totalorder %s166, %s169
      %p175 = scmp.eq.s32.totalorder %s19, 0
      %p176 = por %p174, %p175
      %p177 = scmp.ne.s32.totalorder %s166, %s169
      %p178 = scmp.eq.s32.totalorder %s24, 7
      %p179 = por %p177, %p178
      %p180 = scmp.ne.s32.totalorder %s169, %s170
      %p181 = scmp.eq.s32.totalorder %s24, 0
      %p182 = por %p180, %p181
      %p183 = scmp.ne.s32.totalorder %s169, %s170
      %p184 = scmp.eq.s32.totalorder %s25, 7
      %p185 = por %p183, %p184
      %p187 = scmp.ne.s32.totalorder %s170, %s186
      %p188 = scmp.eq.s32.totalorder %s25, 0
      %p189 = por %p187, %p188
      %s190 = ssub.s32 %s26, %s38
      %s191 = ssub.s32 %s27, %s34
      %s192 = sor.u32 %s190, %s191
      %p193 = scmp.eq.s32.totalorder %s192, 0
      %s195 = sadd.s32 %s194, 1
      %s196 = scalar_select %p193, %s194, %s195
      %p199 = pneg %p193
      %p200 = scmp.eq.s32.totalorder %s19, 7
      %p201 = por %p199, %p200
      %p202 = scmp.ne.s32.totalorder %s194, %s197
      %p203 = scmp.eq.s32.totalorder %s19, 0
      %p204 = por %p202, %p203
      %p205 = scmp.ne.s32.totalorder %s194, %s197
      %p206 = scmp.eq.s32.totalorder %s24, 7
      %p207 = por %p205, %p206
      %p208 = scmp.ne.s32.totalorder %s197, %s198
      %p209 = scmp.eq.s32.totalorder %s24, 0
      %p210 = por %p208, %p209
      %p211 = scmp.ne.s32.totalorder %s197, %s198
      %p212 = scmp.eq.s32.totalorder %s25, 7
      %p213 = por %p211, %p212
      %p215 = scmp.ne.s32.totalorder %s198, %s214
      %p216 = scmp.eq.s32.totalorder %s25, 0
      %p217 = por %p215, %p216
      %p218 = scmp.le.s32.totalorder 1, %s19
      %p219 = scmp.lt.s32.totalorder %s19, 9
      %p220 = pnand %p218, %p219
      %p221 = pneg %p220
      // Predicated region
      $region9: #{tpu_custom_call.1} parent=5 // pred_check
        _
      $region10: #{tpu_custom_call.1} parent=5 // pred_check_branch
        %223 = sbr.rel (%p220) target = $region12
      $region11: #{tpu_custom_call.1} parent=5 // pred_region
        %s224 = ssub.s32 %s19, 1
        // Predicated region
        $region13: #{tpu_custom_call.1} parent=11 // pred_check
          %p225 = pneg %p156
        $region14: #{tpu_custom_call.1} parent=11 // pred_check_branch
          %227 = sbr.rel (%p225) target = $region16
        $region15: #{tpu_custom_call.1} parent=11 // pred_region
          _
        $region16: #{tpu_custom_call.1} parent=11 // pred_fallthru
          _
      $region12: #{tpu_custom_call.1} parent=5 // pred_fallthru
        _
      %p228 = scmp.lt.s32.totalorder %s19, 8
      // Predicated region
      $region17: #{tpu_custom_call.1} parent=5 // pred_check
        %p229 = pneg %p228
      $region18: #{tpu_custom_call.1} parent=5 // pred_check_branch
        %231 = sbr.rel (%p229) target = $region20
      $region19: #{tpu_custom_call.1} parent=5 // pred_region
        // Predicated region
        $region21: #{tpu_custom_call.1} parent=19 // pred_check
          %p232 = pneg %p51
        $region22: #{tpu_custom_call.1} parent=19 // pred_check_branch
          %234 = sbr.rel (%p232) target = $region24
        $region23: #{tpu_custom_call.1} parent=19 // pred_region
          %p235 = scmp.lt.s32.totalorder %s26, 1
          %s236 = scalar_select %p235, %s26, 1
          %s237 = smul.addr %s236, 4
          %s238 = scalar_lea.vmem %s0, %s237
        $region24: #{tpu_custom_call.1} parent=19 // pred_fallthru
          _
        // Predicated region
        $region25: #{tpu_custom_call.1} parent=19 // pred_check
          %p239 = pneg %p77
        $region26: #{tpu_custom_call.1} parent=19 // pred_check_branch
          %241 = sbr.rel (%p239) target = $region28
        $region27: #{tpu_custom_call.1} parent=19 // pred_region
          %p242 = scmp.lt.s32.totalorder %s27, 3
          %s243 = scalar_select %p242, %s27, 3
          %s244 = smul.addr %s243, 4
          %s245 = smul.addr %s244, 4
          %s246 = scalar_lea.vmem %s1, %s245
        $region28: #{tpu_custom_call.1} parent=19 // pred_fallthru
          _
        // Predicated region
        $region29: #{tpu_custom_call.1} parent=19 // pred_check
          %p247 = pneg %p103
        $region30: #{tpu_custom_call.1} parent=19 // pred_check_branch
          %249 = sbr.rel (%p247) target = $region32
        $region31: #{tpu_custom_call.1} parent=19 // pred_region
          %p250 = scmp.lt.s32.totalorder %s27, 3
          %s251 = scalar_select %p250, %s27, 3
          %s252 = scalar_lea.vmem %s2, %s251
        $region32: #{tpu_custom_call.1} parent=19 // pred_fallthru
          _
        // Predicated region
        $region33: #{tpu_custom_call.1} parent=19 // pred_check
          %p253 = pneg %p129
        $region34: #{tpu_custom_call.1} parent=19 // pred_check_branch
          %255 = sbr.rel (%p253) target = $region36
        $region35: #{tpu_custom_call.1} parent=19 // pred_region
          %p256 = scmp.lt.s32.totalorder %s27, 3
          %s257 = scalar_select %p256, %s27, 3
          %s258 = smul.addr %s257, 4
          %s259 = scalar_lea.vmem %s3, %s258
        $region36: #{tpu_custom_call.1} parent=19 // pred_fallthru
          _
      $region20: #{tpu_custom_call.1} parent=5 // pred_fallthru
        _
      %p260 = scmp.le.s32.totalorder 1, %s19
      %p261 = scmp.lt.s32.totalorder %s19, 9
      %p262 = pnand %p260, %p261
      %p263 = pneg %p262
      // Predicated region
      $region37: #{tpu_custom_call.1} parent=5 // pred_check
        _
      $region38: #{tpu_custom_call.1} parent=5 // pred_check_branch
        %265 = sbr.rel (%p262) target = $region40
      $region39: #{tpu_custom_call.1} parent=5 // pred_region
        %s266 = ssub.s32 %s19, 1
        %p267 = scmp.lt.s32.totalorder %s28, 1
        %s268 = scalar_select %p267, %s28, 1
        %s269 = smul.addr %s268, 4
        %s270 = scalar_lea.vmem %s0, %s269
        %p271 = pneg %p57
        %p272 = pneg %p54
        %p273 = scmp.lt.s32.totalorder %s29, 3
        %s274 = scalar_select %p273, %s29, 3
        %s275 = smul.addr %s274, 4
        %s276 = smul.addr %s275, 4
        %s277 = scalar_lea.vmem %s1, %s276
        %p278 = pneg %p83
        %p279 = pneg %p80
        %p280 = scmp.lt.s32.totalorder %s29, 3
        %s281 = scalar_select %p280, %s29, 3
        %s282 = scalar_lea.vmem %s2, %s281
        %p283 = pneg %p109
        %p284 = pneg %p106
        %p285 = scmp.lt.s32.totalorder %s29, 3
        %s286 = scalar_select %p285, %s29, 3
        %s287 = smul.addr %s286, 4
        %s288 = scalar_lea.vmem %s3, %s287
        %p289 = pneg %p135
        %p290 = pneg %p132
        %p291 = pneg %p156
        %p292 = pneg %p153
        %p293 = pneg %p182
        %p294 = pneg %p179
        %s295 = sand.u32 %s169, 1
        %s296 = scalar_lea.sflag [#allocation3], %s295
        %s297 = sand.u32 %s169, 1
        %s298 = smul.addr %s297, 8
        %s299 = scalar_lea.vmem [#allocation2], %s298
        %p300 = pneg %p210
        %p301 = pneg %p207
        %s302 = sand.u32 %s197, 1
        %s303 = scalar_lea.sflag [#allocation5], %s302
        %s304 = sand.u32 %s197, 1
        %s305 = smul.addr %s304, 8
        %s306 = scalar_lea.vmem [#allocation4], %s305
        %p307 = scmp.lt.s32.totalorder %s28, 1
        %s308 = scalar_select %p307, %s28, 1
        %s309 = smul.addr %s308, 4
        %s310 = scalar_lea.vmem %s0, %s309
        %p311 = scmp.lt.s32.totalorder %s29, 3
        %s312 = scalar_select %p311, %s29, 3
        %s313 = smul.addr %s312, 4
        %s314 = smul.addr %s313, 4
        %s315 = scalar_lea.vmem %s1, %s314
        %p316 = scmp.lt.s32.totalorder %s29, 3
        %s317 = scalar_select %p316, %s29, 3
        %s318 = scalar_lea.vmem %s2, %s317
        %p319 = scmp.lt.s32.totalorder %s29, 3
        %s320 = scalar_select %p319, %s29, 3
        %s321 = smul.addr %s320, 4
        %s322 = scalar_lea.vmem %s3, %s321
        %p324 = scmp.eq.s32.totalorder %s29, 0
        // Predicated region
        $region41: #{tpu_custom_call.1} parent=39 // pred_check
          %p325 = pneg %p324
        $region42: #{tpu_custom_call.1} parent=39 // pred_check_branch
          %327 = sbr.rel (%p325) target = $region44
        $region43: #{tpu_custom_call.1} parent=39 // pred_region
          %vm328 = vcmask 261120
          %329 = vst.msk [vmem:[%s299] sm:$0xff] %vm328, 0.0
        $region44: #{tpu_custom_call.1} parent=39 // pred_fallthru
          _
        %v330 = vld [vmem:[%s315] sm:$0xf]
        %v331 = vld [vmem:[%s315 + $0x4] sm:$0xf]
        %v332 = vld [vmem:[%s315 + $0x8] sm:$0xf]
        %v333 = vld [vmem:[%s315 + $0xc] sm:$0xf]
        %v334 = vld [vmem:[%s318] sm:$0x1]
        %v335 = vld [vmem:[%s322] sm:$0xf]
        %v336 = vld [vmem:[%s310] sm:$0xf]
        %v338 = vperm.slane %v334, 0
        %v344 = vunpack.c.l.b16 %v330
        %v345 = vunpack.c.l.b16 %v331
        %v346 = vunpack.c.l.b16 %v332
        %v347 = vunpack.c.l.b16 %v333
        %v348 = vpack.c.b16 %v345, %v344
        %v349 = vpack.c.b16 %v347, %v346
        %vm352 = vcmask 261120
        %v354 = vsel %vm352, %v336, 0
        %356 = vmatpush.bf16.msra.mxu0 0
        %357 = vmatpush.bf16.msra.mxu0 0
        %358 = vmatpush.bf16.msra.mxu0 0
        %359 = vmatpush.bf16.msra.mxu0 0
        %360 = vmatpush.bf16.msra.mxu0 0
        %361 = vmatpush.bf16.msra.mxu0 0
        %362 = vmatpush.bf16.msra.mxu0 %v349
        %363 = vmatpush.bf16.msra.mxu0 %v348
        %364 = vmatmul.bf16.gmra.mxu0 %v354
        %v365 = vpop.f32.mrf.mxu0
        %v366 = vadd.f32 %v338, %v365
        %v367 = vpop.f32.mrf.mxu0
        %368 = vdwg.mxu0
        %v369 = vpack.c.bf16 %v366, %v366
        %v371 = vunpack.c.l.b16 %v369
        %v372 = vpack.c.b16 %v371, %v371
        %373 = vrot.lane.b32.xlu0 %v372, 120
        %v374 = vpop.permute.xlu0 %373
        %vm375 = vcmask 64512
        %v377 = vsel %vm375, %v369, 0
        %v380 = vsel %vm375, %v374, 0
        %382 = vmatpush.bf16.xpose.msra.mxu0 0
        %383 = vmatpush.bf16.xpose.msra.mxu0 0
        %384 = vmatpush.bf16.xpose.msra.mxu0 0
        %385 = vmatpush.bf16.xpose.msra.mxu0 0
        %386 = vmatpush.bf16.xpose.msra.mxu0 0
        %387 = vmatpush.bf16.xpose.msra.mxu0 0
        %388 = vmatpush.bf16.xpose.msra.mxu0 0
        %389 = vmatpush.bf16.xpose.msra.mxu0 %v380
        %390 = vmatmul.bf16.gmra.mxu0 %v377
        %v391 = vpop.f32.mrf.mxu0
        %v392 = vadd.f32 0.0, %v391
        %v393 = vpop.f32.mrf.mxu0
        %394 = vdwg.mxu0
        %v395 = vmul.f32 %v392, 0.35355338
        %v396 = vsel %vm375, %v395, -inf
        %397 = vmax.xlane.f32.xlu0 %v396
        %v398 = vpop.xlane.xlu0 %397
        %v399 = vsub.f32 %v395, %v398
        %v400 = vmul.f32 %v399, 1.442695
        %v401 = vpow.pop %v400
        %v402 = vsel %vm375, %v401, 0.0
        %403 = vadd.xlane.f32.xlu0 %v402
        %v404 = vpop.xlane.xlu0 %403
        %v405 = vrcp.pop %v404
        %v406 = vmul.f32 %v401, %v405
        %407 = vst.msk [vmem:[%s306] sm:$0xff] %vm375, %v406
        %v408 = vpack.c.bf16 %v406, %v406
        %409 = vrot.lane.b32.xlu0 %v372, 112
        %v410 = vpop.permute.xlu0 %409
        %v412 = vsel %vm375, %v408, 0
        %vm414 = vcmask 1043456
        %v416 = vsel %vm414, %v410, 0
        %418 = vmatpush.bf16.msra.mxu0 0
        %419 = vmatpush.bf16.msra.mxu0 0
        %420 = vmatpush.bf16.msra.mxu0 0
        %421 = vmatpush.bf16.msra.mxu0 0
        %422 = vmatpush.bf16.msra.mxu0 0
        %423 = vmatpush.bf16.msra.mxu0 0
        %424 = vmatpush.bf16.msra.mxu0 0
        %425 = vmatpush.bf16.msra.mxu0 %v416
        %426 = vmatmul.bf16.gmra.mxu0 %v412
        %v427 = vpop.f32.mrf.mxu0
        %v428 = vadd.f32 0.0, %v427
        %v429 = vpop.f32.mrf.mxu0
        %430 = vdwg.mxu0
        %v431 = vpack.c.bf16 %v428, %v428
        %v433 = vsel %vm375, %v431, 0
        %v436 = vsel %vm414, %v335, 0
        %438 = vmatpush.bf16.msra.mxu0 0
        %439 = vmatpush.bf16.msra.mxu0 0
        %440 = vmatpush.bf16.msra.mxu0 0
        %441 = vmatpush.bf16.msra.mxu0 0
        %442 = vmatpush.bf16.msra.mxu0 0
        %443 = vmatpush.bf16.msra.mxu0 0
        %444 = vmatpush.bf16.msra.mxu0 0
        %445 = vmatpush.bf16.msra.mxu0 %v436
        %446 = vmatmul.bf16.gmra.mxu0 %v433
        %v447 = vpop.f32.mrf.mxu0
        %v448 = vadd.f32 0.0, %v447
        %v449 = vpop.f32.mrf.mxu0
        %450 = vdwg.mxu0
        %v451 = vld [vmem:[%s299] sm:$0xff]
        %v452 = vadd.f32 %v451, %v448
        %453 = vst.msk [vmem:[%s299] sm:$0xff] %vm352, %v452
        %p454 = scmp.eq.s32.totalorder %s29, 3
        // Predicated region
        $region45: #{tpu_custom_call.1} parent=39 // pred_check
          %p455 = pneg %p454
        $region46: #{tpu_custom_call.1} parent=39 // pred_check_branch
          %457 = sbr.rel (%p455) target = $region48
        $region47: #{tpu_custom_call.1} parent=39 // pred_region
          %v458 = vld [vmem:[%s299] sm:$0xff]
          %v459 = vld [vmem:[%s4] sm:$0x1]
          %v461 = vperm.slane %v459, 0
          %v463 = vadd.f32 %v458, %v461
          %464 = vst.msk [vmem:[%s299] sm:$0xff] %vm352, %v463
        $region48: #{tpu_custom_call.1} parent=39 // pred_fallthru
          _
        %s465 = sand.u32 %s169, 1
        %s466 = scalar_lea.sflag [#allocation3], %s465
        %s467 = sand.u32 %s169, 1
        %s468 = smul.addr %s467, 8
        %s469 = scalar_lea.vmem [#allocation2], %s468
        %s470 = sand.u32 %s197, 1
        %s471 = scalar_lea.sflag [#allocation5], %s470
        %s472 = sand.u32 %s197, 1
        %s473 = smul.addr %s472, 8
        %s474 = scalar_lea.vmem [#allocation4], %s473
        // Predicated region
        $region49: #{tpu_custom_call.1} parent=39 // pred_check
          %p475 = pneg %p179
        $region50: #{tpu_custom_call.1} parent=39 // pred_check_branch
          %477 = sbr.rel (%p475) target = $region52
        $region51: #{tpu_custom_call.1} parent=39 // pred_region
          %479 = vsyncadd %s466, 0
          %s480 = smul.addr %s28, 8
          %s481 = scalar_lea.hbm %s5, %s480
          %s483 = sshll.u32 %s469, 4
          %s484 = int_to_ptr.vmem [resolvable:$true] %s483
          %s485 = sshll.u32 %s481, 4
          %s486 = int_to_ptr.hbm [resolvable:$true] %s485
          %488 = dma.vmem_to_hbm [thread:$0]  %s484, 128, %s486, %s466
        $region52: #{tpu_custom_call.1} parent=39 // pred_fallthru
          _
        // Predicated region
        $region53: #{tpu_custom_call.1} parent=39 // pred_check
          %p489 = pneg %p207
        $region54: #{tpu_custom_call.1} parent=39 // pred_check_branch
          %491 = sbr.rel (%p489) target = $region56
        $region55: #{tpu_custom_call.1} parent=39 // pred_region
          %493 = vsyncadd %s471, 0
          %s494 = smul.addr %s28, 4
          %s495 = sadd.s32 %s29, %s494
          %s496 = smul.addr %s495, 8
          %s497 = scalar_lea.hbm %s6, %s496
          %s499 = sshll.u32 %s474, 4
          %s500 = int_to_ptr.vmem [resolvable:$true] %s499
          %s501 = sshll.u32 %s497, 4
          %s502 = int_to_ptr.hbm [resolvable:$true] %s501
          %504 = dma.vmem_to_hbm [thread:$0]  %s500, 128, %s502, %s471
        $region56: #{tpu_custom_call.1} parent=39 // pred_fallthru
          _
      $region40: #{tpu_custom_call.1} parent=5 // pred_fallthru
        _
      %p505 = scmp.le.s32.totalorder 2, %s19
      // Predicated region
      $region57: #{tpu_custom_call.1} parent=5 // pred_check
        %p506 = pneg %p505
      $region58: #{tpu_custom_call.1} parent=5 // pred_check_branch
        %508 = sbr.rel (%p506) target = $region60
      $region59: #{tpu_custom_call.1} parent=5 // pred_region
        %s509 = ssub.s32 %s19, 2
        // Predicated region
        $region61: #{tpu_custom_call.1} parent=59 // pred_check
          %p510 = pneg %p185
        $region62: #{tpu_custom_call.1} parent=59 // pred_check_branch
          %512 = sbr.rel (%p510) target = $region64
        $region63: #{tpu_custom_call.1} parent=59 // pred_region
          %s513 = sand.u32 %s170, 1
          %s514 = scalar_lea.sflag [#allocation3], %s513
          %s515 = sand.u32 %s170, 1
          %s516 = smul.addr %s515, 8
          %s517 = scalar_lea.vmem [#allocation2], %s516
          %519 = dma.done %s514, 128
        $region64: #{tpu_custom_call.1} parent=59 // pred_fallthru
          _
        // Predicated region
        $region65: #{tpu_custom_call.1} parent=59 // pred_check
          %p520 = pneg %p213
        $region66: #{tpu_custom_call.1} parent=59 // pred_check_branch
          %522 = sbr.rel (%p520) target = $region68
        $region67: #{tpu_custom_call.1} parent=59 // pred_region
          %s523 = sand.u32 %s198, 1
          %s524 = scalar_lea.sflag [#allocation5], %s523
          %s525 = sand.u32 %s198, 1
          %s526 = smul.addr %s525, 8
          %s527 = scalar_lea.vmem [#allocation4], %s526
          %529 = dma.done %s524, 128
        $region68: #{tpu_custom_call.1} parent=59 // pred_fallthru
          _
      $region60: #{tpu_custom_call.1} parent=5 // pred_fallthru
        _
    $region6: #{tpu_custom_call.1} parent=1 // loop_footer
      %s23 = sadd.s32 1, %s19
    $region7: #{tpu_custom_call.1} parent=1 // loop_footer_branch
      %18 = sbr.rel target = $region3
    $region8: #{tpu_custom_call.1} parent=1 // loop_exit
      _
    %530 = vsyncpa [#allocation3], 1
    %s531 = scalar_lea.sflag [#allocation3], 1
    %532 = vsyncpa %s531, 1
    %533 = vsyncpa [#allocation5], 1
    %s534 = scalar_lea.sflag [#allocation5], 1
    %535 = vsyncpa %s534, 1

</llo_original>
